<compile_context>
chip_gen: v7x
topology: tpu7x:2x2x1
jax: 0.10.0
libtpu: 0.0.40
codegen_flags: <defaults>
</compile_context>

<pallas_src>
import jax
import jax.numpy as jnp
from jax import lax
from jax.experimental import pallas as pl
from jax.experimental.pallas import tpu as pltpu


def _linear_sigmoid_kernel(x_ref, w_ref, b_ref, o_ref):
    # x_ref: (B, K)   w_ref: (N, K)   b_ref: (1, N)   o_ref: (B, N)
    # Contract x @ W^T on the MXU without materializing W^T.
    acc = lax.dot_general(
        x_ref[...], w_ref[...],
        dimension_numbers=(((1,), (1,)), ((), ())),
        preferred_element_type=jnp.float32,
    )
    acc = acc + b_ref[...]                       # broadcast (1, N) over rows
    o_ref[...] = jax.nn.sigmoid(acc).astype(o_ref.dtype)


def linear_sigmoid(x, weight, bias, *, batch_tile=512):
    """x: (..., H, W) with H*W == in_features. Returns sigmoid(x.flatten(-2,-1) @ W.T + b)."""
    out_features, in_features = weight.shape
    lead = x.shape[:-2]
    xb = x.reshape((-1, x.shape[-2] * x.shape[-1]))          # (B, in_features)
    assert xb.shape[-1] == in_features
    B = xb.shape[0]
    b2 = bias.reshape((1, out_features))

    if B <= batch_tile:
        # Small batch: single full-array block, no grid, no pipeline bookkeeping.
        out = pl.pallas_call(
            _linear_sigmoid_kernel,
            out_shape=jax.ShapeDtypeStruct((B, out_features), x.dtype),
            in_specs=[
                pl.BlockSpec(memory_space=pltpu.MemorySpace.VMEM),
                pl.BlockSpec(memory_space=pltpu.MemorySpace.VMEM),
                pl.BlockSpec(memory_space=pltpu.MemorySpace.VMEM),
            ],
            out_specs=pl.BlockSpec(memory_space=pltpu.MemorySpace.VMEM),
        )(xb, weight, b2)
    else:
        # Large batch: stream B in TB-row tiles; 'parallel' lets v7x shard the
        # batch axis across its 2 TensorCores (no-op on v5e/v6e).
        tb = batch_tile
        num_tiles = pl.cdiv(B, tb)
        Bp = num_tiles * tb
        xb_p = jnp.pad(xb, ((0, Bp - B), (0, 0))) if Bp != B else xb
        out = pl.pallas_call(
            _linear_sigmoid_kernel,
            out_shape=jax.ShapeDtypeStruct((Bp, out_features), x.dtype),
            grid=(num_tiles,),
            in_specs=[
                pl.BlockSpec((tb, in_features), lambda i: (i, 0)),
                # Weight / bias: full-array blocks, same index every step
                # -> stay resident in VMEM across the grid.
                pl.BlockSpec((out_features, in_features), lambda i: (0, 0)),
                pl.BlockSpec((1, out_features), lambda i: (0, 0)),
            ],
            out_specs=pl.BlockSpec((tb, out_features), lambda i: (i, 0)),
            compiler_params=pltpu.CompilerParams(
                dimension_semantics=("parallel",)),
        )(xb_p, weight, b2)
        out = out[:B]

    return out.reshape(lead + (out_features,))


if __name__ == "__main__":
    key = jax.random.PRNGKey(0)
    k_x, k_w, k_b = jax.random.split(key, 3)

    # Input consistent with the module: last two dims flatten to 81 -> (B, 9, 9)
    x1 = jax.random.normal(k_x, (2, 9, 9), dtype=jnp.float32)

    # Deterministic Linear(81, 10) params (PyTorch-style uniform init bounds)
    in_features, out_features = 81, 10
    bound = 1.0 / (in_features ** 0.5)
    weight = jax.random.uniform(k_w, (out_features, in_features),
                                minval=-bound, maxval=bound, dtype=jnp.float32)
    bias = jax.random.uniform(k_b, (out_features,),
                              minval=-bound, maxval=bound, dtype=jnp.float32)

    out = linear_sigmoid(x1, weight, bias)
    jax.block_until_ready(out)

    # Reference check in plain JAX
    ref = jax.nn.sigmoid(x1.reshape(2, 81) @ weight.T + bias)
    assert out.shape == (2, 10)
    assert jnp.allclose(out, ref, atol=1e-5, rtol=1e-5)

    print("KERNEL_OK")
</pallas_src>

<mosaic_0001>
module attributes {stable_mosaic.version = 11 : i64} {
  func.func @_linear_sigmoid_kernel(%arg0: memref<2x81xf32, #tpu.memory_space<vmem>>, %arg1: memref<10x81xf32, #tpu.memory_space<vmem>>, %arg2: memref<1x10xf32, #tpu.memory_space<vmem>>, %arg3: memref<2x10xf32, #tpu.memory_space<vmem>>) attributes {dimension_semantics = [], scalar_prefetch = 0 : i64, scratch_operands = 0 : i64, tpu.core_type = #tpu.core_type<tc>} {
    %c0 = arith.constant 0 : index
    %c0_0 = arith.constant 0 : index
    %0 = vector.load %arg0[%c0, %c0_0] : memref<2x81xf32, #tpu.memory_space<vmem>>, vector<2x81xf32>
    %c0_1 = arith.constant 0 : index
    %c0_2 = arith.constant 0 : index
    %1 = vector.load %arg1[%c0_1, %c0_2] : memref<10x81xf32, #tpu.memory_space<vmem>>, vector<10x81xf32>
    %cst = arith.constant dense<0.000000e+00> : vector<2x10xf32>
    %2 = tpu.matmul %0, %1, %cst {dimension_numbers = #tpu.dot_dimension_numbers<[1], [1], [0], [0], [0, 0, 1, 0], [], []>} : vector<2x81xf32>, vector<10x81xf32>, vector<2x10xf32> -> vector<2x10xf32>
    %c0_3 = arith.constant 0 : index
    %c0_4 = arith.constant 0 : index
    %3 = vector.load %arg2[%c0_3, %c0_4] : memref<1x10xf32, #tpu.memory_space<vmem>>, vector<1x10xf32>
    %4 = vector.broadcast %3 : vector<1x10xf32> to vector<2x10xf32>
    %5 = arith.addf %2, %4 : vector<2x10xf32>
    %6 = arith.negf %5 : vector<2x10xf32>
    %7 = math.exp %6 : vector<2x10xf32>
    %cst_5 = arith.constant 1.000000e+00 : f32
    %8 = vector.broadcast %cst_5 : f32 to vector<2x10xf32>
    %9 = arith.addf %8, %7 : vector<2x10xf32>
    %10 = arith.divf %8, %9 : vector<2x10xf32>
    %c0_6 = arith.constant 0 : index
    %c0_7 = arith.constant 0 : index
    %11 = vector.load %arg3[%c0_6, %c0_7] : memref<2x10xf32, #tpu.memory_space<vmem>>, vector<2x10xf32>
    tpu.vector_store %arg3[%c0_6, %c0_7], %10 {strides = array<i32>} : memref<2x10xf32, #tpu.memory_space<vmem>>, vector<2x10xf32>,
    return
  }
}

</mosaic_0001>

<llo_original>
// kernel: tpu_custom_call.1
$region0: #{tpu_custom_call.1}
  #allocation0 [shape = 'u32[]', space=smem, size = 0x4, offset = 0x4, fixed_abs, tag = 'smem constant byte address 0x4 - core index']
  #allocation1 [shape = 'u32[144,128]{1,0:T(1,128)}', space=vmem, size = 0x12000, scoped, tag = 'internal scratch']
  %s0 = inlined_call_operand.hbm [shape: f32[2,81], index: 0, kind: input, shape index: {}]
  %s1 = inlined_call_operand.hbm [shape: f32[10,81], index: 1, kind: input, shape index: {}]
  %s2 = inlined_call_operand.vmem [shape: f32[1,10], index: 2, kind: input, shape index: {}]
  %s3 = inlined_call_operand.hbm [shape: f32[2,10], index: 3, kind: output, shape index: {}]
  %s4 = sld [smem:[#allocation0]]
  $region30: #{tpu_custom_call.1} parent=0
    _
  %s6 = ssub.s32 1, %s4
  %s7 = scalar_select 0, %s6, %s4
  $region1: #{tpu_custom_call.1} parent=0
    #allocation2 [shape = 'u8[1024]{0}', space=vmem, size = 0x400, scoped, tag = 'input window, operand 0, single buffered']
    #allocation3 [shape = 's32[1]{0}', space=sflag, size = 0x4, scoped, tag = 'scoped memory for tpu_custom_call.1']
    #allocation4 [shape = 's32[1]{0}', space=sflag, size = 0x4, scoped, tag = 'scoped memory for tpu_custom_call.1']
    #allocation5 [shape = 'u8[8192]{0}', space=vmem, size = 0x2000, scoped, tag = 'input window, operand 1, single buffered']
    #allocation6 [shape = 's32[1]{0}', space=sflag, size = 0x4, scoped, tag = 'scoped memory for tpu_custom_call.1']
    #allocation7 [shape = 'u8[1024]{0}', space=vmem, size = 0x400, scoped, tag = 'output window, operand 0, single buffered']
    %8 = vsyncpa [#allocation3], 0
    %9 = vsyncpa [#allocation6], 0
    %10 = vsyncpa [#allocation4], 0
    // Predicated region
    $region2: #{tpu_custom_call.1} parent=1 // pred_check
      _
    $region3: #{tpu_custom_call.1} parent=1 // pred_check_branch
      %12 = sbr.rel (0) target = $region5
    $region4: #{tpu_custom_call.1} parent=1 // pred_region
      %s14 = ssub.s32 32, 32
      %15 = vsyncadd [#allocation3], %s14
      %s17 = sshll.u32 [#allocation2], 4
      %s18 = int_to_ptr.vmem [resolvable:$true] %s17
      %20 = dma.hbm_to_vmem [thread:$0]  %s0, 32, %s18, [#allocation3]
    $region5: #{tpu_custom_call.1} parent=1 // pred_fallthru
      _
    // Predicated region
    $region6: #{tpu_custom_call.1} parent=1 // pred_check
      _
    $region7: #{tpu_custom_call.1} parent=1 // pred_check_branch
      %22 = sbr.rel (0) target = $region9
    $region8: #{tpu_custom_call.1} parent=1 // pred_region
      %s24 = ssub.s32 256, 256
      %25 = vsyncadd [#allocation6], %s24
      %s26 = sshll.u32 [#allocation5], 4
      %s27 = int_to_ptr.vmem [resolvable:$true] %s26
      %32 = dma.hbm_to_vmem [thread:$0]  %s1, 256, %s27, [#allocation6], 128, 128, 8
    $region9: #{tpu_custom_call.1} parent=1 // pred_fallthru
      _
    // Predicated region
    $region10: #{tpu_custom_call.1} parent=1 // pred_check
      _
    $region11: #{tpu_custom_call.1} parent=1 // pred_check_branch
      %34 = sbr.rel (0) target = $region13
    $region12: #{tpu_custom_call.1} parent=1 // pred_region
      _
    $region13: #{tpu_custom_call.1} parent=1 // pred_fallthru
      _
    // Predicated region
    $region14: #{tpu_custom_call.1} parent=1 // pred_check
      _
    $region15: #{tpu_custom_call.1} parent=1 // pred_check_branch
      %36 = sbr.rel (0) target = $region17
    $region16: #{tpu_custom_call.1} parent=1 // pred_region
      %37 = dma.done [#allocation3], 32
    $region17: #{tpu_custom_call.1} parent=1 // pred_fallthru
      _
    // Predicated region
    $region18: #{tpu_custom_call.1} parent=1 // pred_check
      _
    $region19: #{tpu_custom_call.1} parent=1 // pred_check_branch
      %39 = sbr.rel (0) target = $region21
    $region20: #{tpu_custom_call.1} parent=1 // pred_region
      %40 = dma.done [#allocation6], 256
    $region21: #{tpu_custom_call.1} parent=1 // pred_fallthru
      _
    %v41 = vld [vmem:[#allocation2] sm:$0x3]
    %v42 = vld [vmem:[#allocation5] sm:$0xff]
    %v43 = vld [vmem:[#allocation5 + $0x8] sm:$0x3]
    %v44 = vld [vmem:[%s2] sm:$0x1]
    %v46 = vlaneseq
    %v47 = vshrl.u32 %v46, 7
    %v48 = vsub.s32 0, %v47
    %v49 = vrot.slane %v44, %v48
    %vm51 = vcmask 662528
    %v53 = vsel %vm51, %v41, 0
    %v56 = vsel %vm51, %v42, 0
    %v59 = vsel %vm51, %v43, 0
    %61 = vmatprep.subr.mxu0 0.0
    %62 = vmatpush1.xpose.msra.mxu0 %v56
    %63 = vmatprep.subr.mxu0 0.0
    %64 = vmatpush1.xpose.msra.mxu0 %v59
    %65 = vmatprep.subr.mxu0 0.0
    %66 = vmatpush1.xpose.msra.mxu0 0.0
    %67 = vmatprep.subr.mxu0 0.0
    %68 = vmatpush1.xpose.msra.mxu0 0.0
    %69 = vmatprep.subr.mxu0 0.0
    %70 = vmatpush1.xpose.msra.mxu0 0.0
    %71 = vmatprep.subr.mxu0 0.0
    %72 = vmatpush1.xpose.msra.mxu0 0.0
    %73 = vmatprep.subr.mxu0 0.0
    %74 = vmatpush1.xpose.msra.mxu0 0.0
    %75 = vmatprep.subr.mxu0 0.0
    %76 = vmatpush1.xpose.msra.mxu0 0.0
    %77 = vmatprep.subr.mxu0 0.0
    %78 = vmatpush1.xpose.msra.mxu0 0.0
    %79 = vmatprep.subr.mxu0 0.0
    %80 = vmatpush1.xpose.msra.mxu0 0.0
    %81 = vmatprep.subr.mxu0 0.0
    %82 = vmatpush1.xpose.msra.mxu0 0.0
    %83 = vmatprep.subr.mxu0 0.0
    %84 = vmatpush1.xpose.msra.mxu0 0.0
    %85 = vmatprep.subr.mxu0 0.0
    %86 = vmatpush1.xpose.msra.mxu0 0.0
    %87 = vmatprep.subr.mxu0 0.0
    %88 = vmatpush1.xpose.msra.mxu0 0.0
    %89 = vmatprep.subr.mxu0 0.0
    %90 = vmatpush1.xpose.msra.mxu0 0.0
    %91 = vmatprep.subr.mxu0 0.0
    %92 = vmatpush1.xpose.msra.mxu0 0.0
    %93 = vmatprep.subr.mxu0 0.0
    %94 = vmatpush1.xpose.msra.mxu0 0.0
    %95 = vmatprep.subr.mxu0 0.0
    %96 = vmatpush1.xpose.msra.mxu0 0.0
    %97 = vmatprep.subr.mxu0 0.0
    %98 = vmatpush1.xpose.msra.mxu0 0.0
    %99 = vmatprep.subr.mxu0 0.0
    %100 = vmatpush1.xpose.msra.mxu0 0.0
    %101 = vmatprep.subr.mxu0 0.0
    %102 = vmatpush1.xpose.msra.mxu0 0.0
    %103 = vmatprep.subr.mxu0 0.0
    %104 = vmatpush1.xpose.msra.mxu0 0.0
    %105 = vmatprep.subr.mxu0 0.0
    %106 = vmatpush1.xpose.msra.mxu0 0.0
    %107 = vmatprep.subr.mxu0 0.0
    %108 = vmatpush1.xpose.msra.mxu0 0.0
    %109 = vmatprep.subr.mxu0 0.0
    %110 = vmatpush1.xpose.msra.mxu0 0.0
    %111 = vmatprep.subr.mxu0 0.0
    %112 = vmatpush1.xpose.msra.mxu0 0.0
    %113 = vmatprep.subr.mxu0 0.0
    %114 = vmatpush1.xpose.msra.mxu0 0.0
    %115 = vmatprep.subr.mxu0 0.0
    %116 = vmatpush1.xpose.msra.mxu0 0.0
    %117 = vmatprep.subr.mxu0 0.0
    %118 = vmatpush1.xpose.msra.mxu0 0.0
    %119 = vmatprep.subr.mxu0 0.0
    %120 = vmatpush1.xpose.msra.mxu0 0.0
    %121 = vmatprep.subr.mxu0 0.0
    %122 = vmatpush1.xpose.msra.mxu0 0.0
    %123 = vmatprep.subr.mxu0 0.0
    %124 = vmatpush1.xpose.msra.mxu0 0.0
    %125 = vmatprep.mubr.f32.mxu0 0.0
    %126 = vmatmul.mubr.f32.gmra.mrb[0].mxu0 %v53
    %v127 = vpop.f32.mrb[0].mxu0
    %v128 = vadd.f32 %v49, %v127
    %v129 = vpop.f32.mrb[0].mxu0
    %130 = vdwg.mxu0
    %v131 = vxor.u32 %v128, 2147483648
    %v132 = vmul.f32 %v131, 1.442695
    %v133 = vpow.pop %v132
    %v134 = vadd.f32 %v133, 1.0
    %v135 = vrcp.pop %v134
    %v136 = vmul.f32 1.0, %v135
    %vm137 = vcmask 74752
    %138 = vst.msk [vmem:[#allocation7] sm:$0x3] %vm137, %v136
    // Predicated region
    $region22: #{tpu_custom_call.1} parent=1 // pred_check
      _
    $region23: #{tpu_custom_call.1} parent=1 // pred_check_branch
      %140 = sbr.rel (0) target = $region25
    $region24: #{tpu_custom_call.1} parent=1 // pred_region
      %s142 = ssub.s32 32, 32
      %143 = vsyncadd [#allocation4], %s142
      %s145 = sshll.u32 [#allocation7], 4
      %s146 = int_to_ptr.vmem [resolvable:$true] %s145
      %148 = dma.vmem_to_hbm [thread:$0]  %s146, 32, %s3, [#allocation4]
    $region25: #{tpu_custom_call.1} parent=1 // pred_fallthru
      _
    // Predicated region
    $region26: #{tpu_custom_call.1} parent=1 // pred_check
      _
    $region27: #{tpu_custom_call.1} parent=1 // pred_check_branch
      %150 = sbr.rel (0) target = $region29
    $region28: #{tpu_custom_call.1} parent=1 // pred_region
      %151 = dma.done [#allocation4], 32
    $region29: #{tpu_custom_call.1} parent=1 // pred_fallthru
      _
    %152 = vsyncpa [#allocation3], 1
    %153 = vsyncpa [#allocation6], 1
    %154 = vsyncpa [#allocation4], 1

</llo_original>
